<compile_context>
chip_gen: v5e
topology: v5e:2x2
jax: 0.10.0
libtpu: 0.0.40
codegen_flags: <defaults>
</compile_context>

<pallas_src>
import functools

import jax
import jax.numpy as jnp
from jax.experimental import pallas as pl
from jax.experimental.pallas import tpu as pltpu

_LANES = 128
_XLA_FALLBACK_BYTES = 512 * 1024      # below this, plain XLA beats the kernel launch
_MIN_BLOCK_BYTES = 1 * 1024 * 1024    # block floor: >= 1 MiB keeps ~85%+ of HBM roofline


def _requ_kernel(x_ref, o_ref):
    x = x_ref[...]
    r = jnp.maximum(x, 0)      # relu(x); scalar 0 avoids a zeros splat per block
    o_ref[...] = r * r         # relu(x) * relu(x)


def _requ_xla(x):
    r = jnp.maximum(x, 0)
    return r * r


def _round_up(v, m):
    return ((v + m - 1) // m) * m


def _round_down(v, m):
    return (v // m) * m


@functools.lru_cache(maxsize=1)
def _tpu_generation():
    """Best-effort device sniff: (is_v7x, tensorcores_per_chip)."""
    try:
        kind = jax.devices()[0].device_kind.lower()
    except Exception:  # pragma: no cover - defensive
        kind = ""
    is_v7 = ("v7" in kind) or ("tpu7" in kind) or ("7x" in kind)
    return is_v7, (2 if is_v7 else 1)


def requ(x: jax.Array) -> jax.Array:
    """Elementwise ReQU: relu(x) * relu(x), Pallas TPU kernel for large inputs."""
    orig_shape = x.shape
    dtype = x.dtype
    n = x.size
    if n == 0:
        return x

    itemsize = jnp.dtype(dtype).itemsize
    total_bytes = n * itemsize

    # Tiny inputs / ragged element counts: a fused XLA elementwise op is already
    # at roofline, avoids pallas launch overhead, and avoids any pad+slice
    # full-tensor HBM copies.
    if total_bytes < _XLA_FALLBACK_BYTES or n % _LANES != 0:
        return _requ_xla(x)

    is_v7, n_cores = _tpu_generation()
    block_bytes = (8 if is_v7 else 4) * 1024 * 1024
    vmem_limit = (48 if is_v7 else 32) * 1024 * 1024

    sublanes = {4: 8, 2: 16, 1: 32}.get(itemsize, 8)
    rows = n // _LANES
    x2d = x.reshape(rows, _LANES)   # lane-dense 2D view; no pad, no extra copy

    # --- Tile / grid selection --------------------------------------------
    tm_cap = max(_round_down(block_bytes // (_LANES * itemsize), sublanes), sublanes)
    floor_rows = max(_MIN_BLOCK_BYTES // (_LANES * itemsize), sublanes)
    min_steps = 8 if n_cores >= 2 else 4   # pipelining depth target per chip

    n_steps = min(min_steps, max(rows // floor_rows, 1))
    if n_cores >= 2 and n_steps >= 2:
        n_steps -= n_steps % 2             # even split -> equal bytes per TensorCore
    tm = min(tm_cap, _round_up(pl.cdiv(rows, n_steps), sublanes))
    if tm >= rows:
        tm = rows                          # single full-extent block (always legal)
    grid = (pl.cdiv(rows, tm),)            # ragged last block handled by masked stores

    def run(semantics):
        return pl.pallas_call(
            _requ_kernel,
            out_shape=jax.ShapeDtypeStruct((rows, _LANES), dtype),
            grid_spec=pltpu.PrefetchScalarGridSpec(
                num_scalar_prefetch=0,
                grid=grid,
                in_specs=[pl.BlockSpec((tm, _LANES), lambda i: (i, 0))],
                out_specs=pl.BlockSpec((tm, _LANES), lambda i: (i, 0)),
            ),
            compiler_params=pltpu.CompilerParams(
                dimension_semantics=semantics,
                vmem_limit_bytes=vmem_limit,
            ),
            cost_estimate=pl.CostEstimate(
                flops=2 * n,
                transcendentals=0,
                bytes_accessed=2 * total_bytes,
            ),
        )(x2d)

    if n_cores >= 2 and grid[0] >= 2:
        # v7x: CORE_PARALLEL actually shards grid steps across both TensorCores
        # (plain "parallel" barely changes codegen).
        try:
            return run((pltpu.CORE_PARALLEL,)).reshape(orig_shape)
        except Exception:
            pass  # conservative fallback if this chip/runtime rejects it
    return run(("parallel",)).reshape(orig_shape)


if __name__ == "__main__":
    def ref(x):
        r = jnp.maximum(x, 0)
        return r * r

    # 1) Small conv-activation-like input (module-typical shape): handled by
    #    the small-input XLA fast path (grid=(1,) regime).
    x_small = jax.random.normal(jax.random.PRNGKey(0), (2, 4, 16, 16), dtype=jnp.float32)
    out_small = jax.block_until_ready(requ(x_small))
    assert out_small.shape == x_small.shape and out_small.dtype == x_small.dtype
    assert jnp.allclose(out_small, ref(x_small), atol=1e-6, rtol=1e-6)

    # 2) Medium activation (2 MiB): exercises the Pallas kernel path
    #    (multiple 1 MiB lane-dense blocks).
    x_med = jax.random.normal(jax.random.PRNGKey(1), (8, 16, 64, 64), dtype=jnp.float32)
    out_med = jax.block_until_ready(requ(x_med))
    assert out_med.shape == x_med.shape and out_med.dtype == x_med.dtype
    assert jnp.allclose(out_med, ref(x_med), atol=1e-6, rtol=1e-6)

    # 3) Ragged element count (n % 128 != 0): XLA fallback, no pad/slice traffic.
    x_rag = jax.random.normal(jax.random.PRNGKey(2), (3, 5, 7, 11), dtype=jnp.float32)
    out_rag = jax.block_until_ready(requ(x_rag))
    assert out_rag.shape == x_rag.shape and out_rag.dtype == x_rag.dtype
    assert jnp.allclose(out_rag, ref(x_rag), atol=1e-6, rtol=1e-6)

    print("KERNEL_OK")
</pallas_src>

<mosaic_0001>
module attributes {stable_mosaic.version = 11 : i64} {
  func.func @_requ_kernel(%arg0: i32, %arg1: memref<2048x128xf32, #tpu.memory_space<vmem>>, %arg2: memref<2048x128xf32, #tpu.memory_space<vmem>>) attributes {dimension_semantics = [#tpu.dimension_semantics<parallel>], iteration_bounds = array<i64: 2>, scalar_prefetch = 0 : i64, scratch_operands = 0 : i64, tpu.core_type = #tpu.core_type<tc>, window_params = [{transform_indices = @transform_0, window_bounds = array<i64: 2048, 128>}, {transform_indices = @transform_1, window_bounds = array<i64: 2048, 128>}]} {
    %c0 = arith.constant 0 : index
    %c0_0 = arith.constant 0 : index
    %0 = vector.load %arg1[%c0, %c0_0] : memref<2048x128xf32, #tpu.memory_space<vmem>>, vector<2048x128xf32>
    %cst = arith.constant 0.000000e+00 : f32
    %1 = vector.broadcast %cst : f32 to vector<2048x128xf32>
    %2 = arith.maximumf %0, %1 : vector<2048x128xf32>
    %3 = arith.mulf %2, %2 : vector<2048x128xf32>
    %c0_1 = arith.constant 0 : index
    %c0_2 = arith.constant 0 : index
    %4 = vector.load %arg2[%c0_1, %c0_2] : memref<2048x128xf32, #tpu.memory_space<vmem>>, vector<2048x128xf32>
    tpu.vector_store %arg2[%c0_1, %c0_2], %3 {strides = array<i32>} : memref<2048x128xf32, #tpu.memory_space<vmem>>, vector<2048x128xf32>,
    return
  }
  func.func @transform_0(%arg0: i32) -> (i32, i32) {
    %c0_i32 = arith.constant 0 : i32
    %c0_i32_0 = arith.constant 0 : i32
    return %arg0, %c0_i32 : i32, i32
  }
  func.func @transform_1(%arg0: i32) -> (i32, i32) {
    %c0_i32 = arith.constant 0 : i32
    %c0_i32_0 = arith.constant 0 : i32
    return %arg0, %c0_i32 : i32, i32
  }
}

</mosaic_0001>

<llo_original>
// kernel: tpu_custom_call.1
$region0: #{tpu_custom_call.1}
  #allocation0 [shape = 'u32[]', space=smem, size = 0x4, offset = 0x4, fixed_abs, tag = 'smem constant byte address 0x4 - core index']
  #allocation1 [shape = 'u32[72,128]{1,0:T(1,128)}', space=vmem, size = 0x9000, scoped, tag = 'internal scratch']
  %s0 = inlined_call_operand.hbm [shape: f32[4096,128], index: 0, kind: input, shape index: {}]
  %s1 = inlined_call_operand.hbm [shape: f32[4096,128], index: 1, kind: output, shape index: {}]
  %s2 = sld [smem:[#allocation0]]
  $region41: #{tpu_custom_call.1} parent=0
    _
  %s4 = ssub.s32 1, %s2
  %s5 = scalar_select 0, %s4, %s2
  $region1: #{tpu_custom_call.1} parent=0
    #allocation2 [shape = 'u8[2097152]{0}', space=vmem, size = 0x200000, scoped, tag = 'input window, operand 0']
    #allocation3 [shape = 's32[2]{0}', space=sflag, size = 0x8, scoped, tag = 'scoped memory for tpu_custom_call.1']
    #allocation4 [shape = 's32[2]{0}', space=sflag, size = 0x8, scoped, tag = 'scoped memory for tpu_custom_call.1']
    #allocation5 [shape = 'u8[2097152]{0}', space=vmem, size = 0x200000, scoped, tag = 'output window, operand 0']
    %6 = vsyncpa [#allocation3], 0
    %s7 = scalar_lea.sflag [#allocation3], 1
    %8 = vsyncpa %s7, 0
    %9 = vsyncpa [#allocation4], 0
    %s10 = scalar_lea.sflag [#allocation4], 1
    %11 = vsyncpa %s10, 0
    loop: start=0, step=1, limit=4
    $region2: #{tpu_custom_call.1} parent=1 // loop_pre_header
      _
    $region3: #{tpu_custom_call.1} parent=1 // loop_header
      %s13 = sphi 0, %s17
      %p14 = scmp.ge.s32.totalorder %s13, 4
      %s23 = sphi 0, %s25
      %s26 = sphi 0, %s23
      %s27 = sphi 0, %s26
      %s43 = sphi 0, %s27
      %s49 = sphi 0, %s51
      %s52 = sphi 0, %s49
      %s53 = sphi 0, %s52
      %s69 = sphi 0, %s53
    $region4: #{tpu_custom_call.1} parent=1 // loop_header_branch
      %16 = sbr.rel (%p14) target = $region8
    $region5: #{tpu_custom_call.1} parent=1 // loop_body
      %s18 = ssub.s32 %s13, 1
      %s19 = ssub.s32 %s13, 2
      %s20 = sadd.s32 %s13, 1
      %s21 = ssub.s32 %s13, %s20
      %p22 = scmp.eq.s32.totalorder %s21, 0
      %s24 = sadd.s32 %s23, 1
      %s25 = scalar_select %p22, %s23, %s24
      %p28 = pneg %p22
      %p29 = scmp.eq.s32.totalorder %s13, 1
      %p30 = por %p28, %p29
      %p31 = scmp.ne.s32.totalorder %s23, %s26
      %p32 = scmp.eq.s32.totalorder %s13, 0
      %p33 = por %p31, %p32
      %p34 = scmp.ne.s32.totalorder %s23, %s26
      %p35 = scmp.eq.s32.totalorder %s18, 1
      %p36 = por %p34, %p35
      %p37 = scmp.ne.s32.totalorder %s26, %s27
      %p38 = scmp.eq.s32.totalorder %s18, 0
      %p39 = por %p37, %p38
      %p40 = scmp.ne.s32.totalorder %s26, %s27
      %p41 = scmp.eq.s32.totalorder %s19, 1
      %p42 = por %p40, %p41
      %p44 = scmp.ne.s32.totalorder %s27, %s43
      %p45 = scmp.eq.s32.totalorder %s19, 0
      %p46 = por %p44, %p45
      %s47 = ssub.s32 %s13, %s20
      %p48 = scmp.eq.s32.totalorder %s47, 0
      %s50 = sadd.s32 %s49, 1
      %s51 = scalar_select %p48, %s49, %s50
      %p54 = pneg %p48
      %p55 = scmp.eq.s32.totalorder %s13, 1
      %p56 = por %p54, %p55
      %p57 = scmp.ne.s32.totalorder %s49, %s52
      %p58 = scmp.eq.s32.totalorder %s13, 0
      %p59 = por %p57, %p58
      %p60 = scmp.ne.s32.totalorder %s49, %s52
      %p61 = scmp.eq.s32.totalorder %s18, 1
      %p62 = por %p60, %p61
      %p63 = scmp.ne.s32.totalorder %s52, %s53
      %p64 = scmp.eq.s32.totalorder %s18, 0
      %p65 = por %p63, %p64
      %p66 = scmp.ne.s32.totalorder %s52, %s53
      %p67 = scmp.eq.s32.totalorder %s19, 1
      %p68 = por %p66, %p67
      %p70 = scmp.ne.s32.totalorder %s53, %s69
      %p71 = scmp.eq.s32.totalorder %s19, 0
      %p72 = por %p70, %p71
      %p73 = scmp.le.s32.totalorder 1, %s13
      %p74 = scmp.lt.s32.totalorder %s13, 3
      %p75 = pnand %p73, %p74
      %p76 = pneg %p75
      // Predicated region
      $region9: #{tpu_custom_call.1} parent=5 // pred_check
        _
      $region10: #{tpu_custom_call.1} parent=5 // pred_check_branch
        %78 = sbr.rel (%p75) target = $region12
      $region11: #{tpu_custom_call.1} parent=5 // pred_region
        %s79 = ssub.s32 %s13, 1
      $region12: #{tpu_custom_call.1} parent=5 // pred_fallthru
        _
      %p80 = scmp.lt.s32.totalorder %s13, 2
      // Predicated region
      $region13: #{tpu_custom_call.1} parent=5 // pred_check
        %p81 = pneg %p80
      $region14: #{tpu_custom_call.1} parent=5 // pred_check_branch
        %83 = sbr.rel (%p81) target = $region16
      $region15: #{tpu_custom_call.1} parent=5 // pred_region
        // Predicated region
        $region17: #{tpu_custom_call.1} parent=15 // pred_check
          %p84 = pneg %p33
        $region18: #{tpu_custom_call.1} parent=15 // pred_check_branch
          %86 = sbr.rel (%p84) target = $region20
        $region19: #{tpu_custom_call.1} parent=15 // pred_region
          %s87 = sand.u32 %s23, 1
          %s88 = scalar_lea.sflag [#allocation3], %s87
          %s89 = sand.u32 %s23, 1
          %s90 = smul.addr %s89, 2048
          %s91 = scalar_lea.vmem [#allocation2], %s90
          %s92 = smul.u32 256, %s13
          %94 = vsyncadd %s88, 0
          %s95 = smul.addr %s92, 8
          %s96 = scalar_lea.hbm %s0, %s95
          %s97 = sshll.u32 %s96, 4
          %s98 = int_to_ptr.hbm [resolvable:$true] %s97
          %s99 = sshll.u32 %s91, 4
          %s100 = int_to_ptr.vmem [resolvable:$true] %s99
          %105 = dma.hbm_to_vmem [thread:$0]  %s98, 32768, %s100, %s88, 128, 128, 8
        $region20: #{tpu_custom_call.1} parent=15 // pred_fallthru
          _
      $region16: #{tpu_custom_call.1} parent=5 // pred_fallthru
        _
      %p106 = scmp.le.s32.totalorder 1, %s13
      %p107 = scmp.lt.s32.totalorder %s13, 3
      %p108 = pnand %p106, %p107
      %p109 = pneg %p108
      // Predicated region
      $region21: #{tpu_custom_call.1} parent=5 // pred_check
        _
      $region22: #{tpu_custom_call.1} parent=5 // pred_check_branch
        %111 = sbr.rel (%p108) target = $region24
      $region23: #{tpu_custom_call.1} parent=5 // pred_region
        %s112 = ssub.s32 %s13, 1
        %s113 = sand.u32 %s26, 1
        %s114 = scalar_lea.sflag [#allocation3], %s113
        %s115 = sand.u32 %s26, 1
        %s116 = smul.addr %s115, 2048
        %s117 = scalar_lea.vmem [#allocation2], %s116
        // Predicated region
        $region25: #{tpu_custom_call.1} parent=23 // pred_check
          %p118 = pneg %p39
        $region26: #{tpu_custom_call.1} parent=23 // pred_check_branch
          %120 = sbr.rel (%p118) target = $region28
        $region27: #{tpu_custom_call.1} parent=23 // pred_region
          %122 = dma.done %s114, 32768
        $region28: #{tpu_custom_call.1} parent=23 // pred_fallthru
          _
        %s123 = sand.u32 %s26, 1
        %s124 = scalar_lea.sflag [#allocation3], %s123
        %s125 = sand.u32 %s26, 1
        %s126 = smul.addr %s125, 2048
        %s127 = scalar_lea.vmem [#allocation2], %s126
        %p128 = pneg %p39
        %p129 = pneg %p36
        %p130 = pneg %p65
        %p131 = pneg %p62
        %s132 = sand.u32 %s52, 1
        %s133 = scalar_lea.sflag [#allocation4], %s132
        %s134 = sand.u32 %s52, 1
        %s135 = smul.addr %s134, 2048
        %s136 = scalar_lea.vmem [#allocation5], %s135
        %s137 = smul.u32 256, %s18
        %s138 = smul.u32 256, %s18
        %v139 = vld [vmem:[%s117] sm:$0xff]
        %v140 = vld [vmem:[%s117 + $0x8] sm:$0xff]
        %v141 = vld [vmem:[%s117 + $0x10] sm:$0xff]
        %v142 = vld [vmem:[%s117 + $0x18] sm:$0xff]
        %v143 = vld [vmem:[%s117 + $0x20] sm:$0xff]
        %v144 = vld [vmem:[%s117 + $0x28] sm:$0xff]
        %v145 = vld [vmem:[%s117 + $0x30] sm:$0xff]
        %v146 = vld [vmem:[%s117 + $0x38] sm:$0xff]
        %v147 = vld [vmem:[%s117 + $0x40] sm:$0xff]
        %v148 = vld [vmem:[%s117 + $0x48] sm:$0xff]
        %v149 = vld [vmem:[%s117 + $0x50] sm:$0xff]
        %v150 = vld [vmem:[%s117 + $0x58] sm:$0xff]
        %v151 = vld [vmem:[%s117 + $0x60] sm:$0xff]
        %v152 = vld [vmem:[%s117 + $0x68] sm:$0xff]
        %v153 = vld [vmem:[%s117 + $0x70] sm:$0xff]
        %v154 = vld [vmem:[%s117 + $0x78] sm:$0xff]
        %v155 = vld [vmem:[%s117 + $0x80] sm:$0xff]
        %v156 = vld [vmem:[%s117 + $0x88] sm:$0xff]
        %v157 = vld [vmem:[%s117 + $0x90] sm:$0xff]
        %v158 = vld [vmem:[%s117 + $0x98] sm:$0xff]
        %v159 = vld [vmem:[%s117 + $0xa0] sm:$0xff]
        %v160 = vld [vmem:[%s117 + $0xa8] sm:$0xff]
        %v161 = vld [vmem:[%s117 + $0xb0] sm:$0xff]
        %v162 = vld [vmem:[%s117 + $0xb8] sm:$0xff]
        %v163 = vld [vmem:[%s117 + $0xc0] sm:$0xff]
        %v164 = vld [vmem:[%s117 + $0xc8] sm:$0xff]
        %v165 = vld [vmem:[%s117 + $0xd0] sm:$0xff]
        %v166 = vld [vmem:[%s117 + $0xd8] sm:$0xff]
        %v167 = vld [vmem:[%s117 + $0xe0] sm:$0xff]
        %v168 = vld [vmem:[%s117 + $0xe8] sm:$0xff]
        %v169 = vld [vmem:[%s117 + $0xf0] sm:$0xff]
        %v170 = vld [vmem:[%s117 + $0xf8] sm:$0xff]
        %v171 = vld [vmem:[%s117 + $0x100] sm:$0xff]
        %v172 = vld [vmem:[%s117 + $0x108] sm:$0xff]
        %v173 = vld [vmem:[%s117 + $0x110] sm:$0xff]
        %v174 = vld [vmem:[%s117 + $0x118] sm:$0xff]
        %v175 = vld [vmem:[%s117 + $0x120] sm:$0xff]
        %v176 = vld [vmem:[%s117 + $0x128] sm:$0xff]
        %v177 = vld [vmem:[%s117 + $0x130] sm:$0xff]
        %v178 = vld [vmem:[%s117 + $0x138] sm:$0xff]
        %v179 = vld [vmem:[%s117 + $0x140] sm:$0xff]
        %v180 = vld [vmem:[%s117 + $0x148] sm:$0xff]
        %v181 = vld [vmem:[%s117 + $0x150] sm:$0xff]
        %v182 = vld [vmem:[%s117 + $0x158] sm:$0xff]
        %v183 = vld [vmem:[%s117 + $0x160] sm:$0xff]
        %v184 = vld [vmem:[%s117 + $0x168] sm:$0xff]
        %v185 = vld [vmem:[%s117 + $0x170] sm:$0xff]
        %v186 = vld [vmem:[%s117 + $0x178] sm:$0xff]
        %v187 = vld [vmem:[%s117 + $0x180] sm:$0xff]
        %v188 = vld [vmem:[%s117 + $0x188] sm:$0xff]
        %v189 = vld [vmem:[%s117 + $0x190] sm:$0xff]
        %v190 = vld [vmem:[%s117 + $0x198] sm:$0xff]
        %v191 = vld [vmem:[%s117 + $0x1a0] sm:$0xff]
        %v192 = vld [vmem:[%s117 + $0x1a8] sm:$0xff]
        %v193 = vld [vmem:[%s117 + $0x1b0] sm:$0xff]
        %v194 = vld [vmem:[%s117 + $0x1b8] sm:$0xff]
        %v195 = vld [vmem:[%s117 + $0x1c0] sm:$0xff]
        %v196 = vld [vmem:[%s117 + $0x1c8] sm:$0xff]
        %v197 = vld [vmem:[%s117 + $0x1d0] sm:$0xff]
        %v198 = vld [vmem:[%s117 + $0x1d8] sm:$0xff]
        %v199 = vld [vmem:[%s117 + $0x1e0] sm:$0xff]
        %v200 = vld [vmem:[%s117 + $0x1e8] sm:$0xff]
        %v201 = vld [vmem:[%s117 + $0x1f0] sm:$0xff]
        %v202 = vld [vmem:[%s117 + $0x1f8] sm:$0xff]
        %v203 = vld [vmem:[%s117 + $0x200] sm:$0xff]
        %v204 = vld [vmem:[%s117 + $0x208] sm:$0xff]
        %v205 = vld [vmem:[%s117 + $0x210] sm:$0xff]
        %v206 = vld [vmem:[%s117 + $0x218] sm:$0xff]
        %v207 = vld [vmem:[%s117 + $0x220] sm:$0xff]
        %v208 = vld [vmem:[%s117 + $0x228] sm:$0xff]
        %v209 = vld [vmem:[%s117 + $0x230] sm:$0xff]
        %v210 = vld [vmem:[%s117 + $0x238] sm:$0xff]
        %v211 = vld [vmem:[%s117 + $0x240] sm:$0xff]
        %v212 = vld [vmem:[%s117 + $0x248] sm:$0xff]
        %v213 = vld [vmem:[%s117 + $0x250] sm:$0xff]
        %v214 = vld [vmem:[%s117 + $0x258] sm:$0xff]
        %v215 = vld [vmem:[%s117 + $0x260] sm:$0xff]
        %v216 = vld [vmem:[%s117 + $0x268] sm:$0xff]
        %v217 = vld [vmem:[%s117 + $0x270] sm:$0xff]
        %v218 = vld [vmem:[%s117 + $0x278] sm:$0xff]
        %v219 = vld [vmem:[%s117 + $0x280] sm:$0xff]
        %v220 = vld [vmem:[%s117 + $0x288] sm:$0xff]
        %v221 = vld [vmem:[%s117 + $0x290] sm:$0xff]
        %v222 = vld [vmem:[%s117 + $0x298] sm:$0xff]
        %v223 = vld [vmem:[%s117 + $0x2a0] sm:$0xff]
        %v224 = vld [vmem:[%s117 + $0x2a8] sm:$0xff]
        %v225 = vld [vmem:[%s117 + $0x2b0] sm:$0xff]
        %v226 = vld [vmem:[%s117 + $0x2b8] sm:$0xff]
        %v227 = vld [vmem:[%s117 + $0x2c0] sm:$0xff]
        %v228 = vld [vmem:[%s117 + $0x2c8] sm:$0xff]
        %v229 = vld [vmem:[%s117 + $0x2d0] sm:$0xff]
        %v230 = vld [vmem:[%s117 + $0x2d8] sm:$0xff]
        %v231 = vld [vmem:[%s117 + $0x2e0] sm:$0xff]
        %v232 = vld [vmem:[%s117 + $0x2e8] sm:$0xff]
        %v233 = vld [vmem:[%s117 + $0x2f0] sm:$0xff]
        %v234 = vld [vmem:[%s117 + $0x2f8] sm:$0xff]
        %v235 = vld [vmem:[%s117 + $0x300] sm:$0xff]
        %v236 = vld [vmem:[%s117 + $0x308] sm:$0xff]
        %v237 = vld [vmem:[%s117 + $0x310] sm:$0xff]
        %v238 = vld [vmem:[%s117 + $0x318] sm:$0xff]
        %v239 = vld [vmem:[%s117 + $0x320] sm:$0xff]
        %v240 = vld [vmem:[%s117 + $0x328] sm:$0xff]
        %v241 = vld [vmem:[%s117 + $0x330] sm:$0xff]
        %v242 = vld [vmem:[%s117 + $0x338] sm:$0xff]
        %v243 = vld [vmem:[%s117 + $0x340] sm:$0xff]
        %v244 = vld [vmem:[%s117 + $0x348] sm:$0xff]
        %v245 = vld [vmem:[%s117 + $0x350] sm:$0xff]
        %v246 = vld [vmem:[%s117 + $0x358] sm:$0xff]
        %v247 = vld [vmem:[%s117 + $0x360] sm:$0xff]
        %v248 = vld [vmem:[%s117 + $0x368] sm:$0xff]
        %v249 = vld [vmem:[%s117 + $0x370] sm:$0xff]
        %v250 = vld [vmem:[%s117 + $0x378] sm:$0xff]
        %v251 = vld [vmem:[%s117 + $0x380] sm:$0xff]
        %v252 = vld [vmem:[%s117 + $0x388] sm:$0xff]
        %v253 = vld [vmem:[%s117 + $0x390] sm:$0xff]
        %v254 = vld [vmem:[%s117 + $0x398] sm:$0xff]
        %v255 = vld [vmem:[%s117 + $0x3a0] sm:$0xff]
        %v256 = vld [vmem:[%s117 + $0x3a8] sm:$0xff]
        %v257 = vld [vmem:[%s117 + $0x3b0] sm:$0xff]
        %v258 = vld [vmem:[%s117 + $0x3b8] sm:$0xff]
        %v259 = vld [vmem:[%s117 + $0x3c0] sm:$0xff]
        %v260 = vld [vmem:[%s117 + $0x3c8] sm:$0xff]
        %v261 = vld [vmem:[%s117 + $0x3d0] sm:$0xff]
        %v262 = vld [vmem:[%s117 + $0x3d8] sm:$0xff]
        %v263 = vld [vmem:[%s117 + $0x3e0] sm:$0xff]
        %v264 = vld [vmem:[%s117 + $0x3e8] sm:$0xff]
        %v265 = vld [vmem:[%s117 + $0x3f0] sm:$0xff]
        %v266 = vld [vmem:[%s117 + $0x3f8] sm:$0xff]
        %v267 = vld [vmem:[%s117 + $0x400] sm:$0xff]
        %v268 = vld [vmem:[%s117 + $0x408] sm:$0xff]
        %v269 = vld [vmem:[%s117 + $0x410] sm:$0xff]
        %v270 = vld [vmem:[%s117 + $0x418] sm:$0xff]
        %v271 = vld [vmem:[%s117 + $0x420] sm:$0xff]
        %v272 = vld [vmem:[%s117 + $0x428] sm:$0xff]
        %v273 = vld [vmem:[%s117 + $0x430] sm:$0xff]
        %v274 = vld [vmem:[%s117 + $0x438] sm:$0xff]
        %v275 = vld [vmem:[%s117 + $0x440] sm:$0xff]
        %v276 = vld [vmem:[%s117 + $0x448] sm:$0xff]
        %v277 = vld [vmem:[%s117 + $0x450] sm:$0xff]
        %v278 = vld [vmem:[%s117 + $0x458] sm:$0xff]
        %v279 = vld [vmem:[%s117 + $0x460] sm:$0xff]
        %v280 = vld [vmem:[%s117 + $0x468] sm:$0xff]
        %v281 = vld [vmem:[%s117 + $0x470] sm:$0xff]
        %v282 = vld [vmem:[%s117 + $0x478] sm:$0xff]
        %v283 = vld [vmem:[%s117 + $0x480] sm:$0xff]
        %v284 = vld [vmem:[%s117 + $0x488] sm:$0xff]
        %v285 = vld [vmem:[%s117 + $0x490] sm:$0xff]
        %v286 = vld [vmem:[%s117 + $0x498] sm:$0xff]
        %v287 = vld [vmem:[%s117 + $0x4a0] sm:$0xff]
        %v288 = vld [vmem:[%s117 + $0x4a8] sm:$0xff]
        %v289 = vld [vmem:[%s117 + $0x4b0] sm:$0xff]
        %v290 = vld [vmem:[%s117 + $0x4b8] sm:$0xff]
        %v291 = vld [vmem:[%s117 + $0x4c0] sm:$0xff]
        %v292 = vld [vmem:[%s117 + $0x4c8] sm:$0xff]
        %v293 = vld [vmem:[%s117 + $0x4d0] sm:$0xff]
        %v294 = vld [vmem:[%s117 + $0x4d8] sm:$0xff]
        %v295 = vld [vmem:[%s117 + $0x4e0] sm:$0xff]
        %v296 = vld [vmem:[%s117 + $0x4e8] sm:$0xff]
        %v297 = vld [vmem:[%s117 + $0x4f0] sm:$0xff]
        %v298 = vld [vmem:[%s117 + $0x4f8] sm:$0xff]
        %v299 = vld [vmem:[%s117 + $0x500] sm:$0xff]
        %v300 = vld [vmem:[%s117 + $0x508] sm:$0xff]
        %v301 = vld [vmem:[%s117 + $0x510] sm:$0xff]
        %v302 = vld [vmem:[%s117 + $0x518] sm:$0xff]
        %v303 = vld [vmem:[%s117 + $0x520] sm:$0xff]
        %v304 = vld [vmem:[%s117 + $0x528] sm:$0xff]
        %v305 = vld [vmem:[%s117 + $0x530] sm:$0xff]
        %v306 = vld [vmem:[%s117 + $0x538] sm:$0xff]
        %v307 = vld [vmem:[%s117 + $0x540] sm:$0xff]
        %v308 = vld [vmem:[%s117 + $0x548] sm:$0xff]
        %v309 = vld [vmem:[%s117 + $0x550] sm:$0xff]
        %v310 = vld [vmem:[%s117 + $0x558] sm:$0xff]
        %v311 = vld [vmem:[%s117 + $0x560] sm:$0xff]
        %v312 = vld [vmem:[%s117 + $0x568] sm:$0xff]
        %v313 = vld [vmem:[%s117 + $0x570] sm:$0xff]
        %v314 = vld [vmem:[%s117 + $0x578] sm:$0xff]
        %v315 = vld [vmem:[%s117 + $0x580] sm:$0xff]
        %v316 = vld [vmem:[%s117 + $0x588] sm:$0xff]
        %v317 = vld [vmem:[%s117 + $0x590] sm:$0xff]
        %v318 = vld [vmem:[%s117 + $0x598] sm:$0xff]
        %v319 = vld [vmem:[%s117 + $0x5a0] sm:$0xff]
        %v320 = vld [vmem:[%s117 + $0x5a8] sm:$0xff]
        %v321 = vld [vmem:[%s117 + $0x5b0] sm:$0xff]
        %v322 = vld [vmem:[%s117 + $0x5b8] sm:$0xff]
        %v323 = vld [vmem:[%s117 + $0x5c0] sm:$0xff]
        %v324 = vld [vmem:[%s117 + $0x5c8] sm:$0xff]
        %v325 = vld [vmem:[%s117 + $0x5d0] sm:$0xff]
        %v326 = vld [vmem:[%s117 + $0x5d8] sm:$0xff]
        %v327 = vld [vmem:[%s117 + $0x5e0] sm:$0xff]
        %v328 = vld [vmem:[%s117 + $0x5e8] sm:$0xff]
        %v329 = vld [vmem:[%s117 + $0x5f0] sm:$0xff]
        %v330 = vld [vmem:[%s117 + $0x5f8] sm:$0xff]
        %v331 = vld [vmem:[%s117 + $0x600] sm:$0xff]
        %v332 = vld [vmem:[%s117 + $0x608] sm:$0xff]
        %v333 = vld [vmem:[%s117 + $0x610] sm:$0xff]
        %v334 = vld [vmem:[%s117 + $0x618] sm:$0xff]
        %v335 = vld [vmem:[%s117 + $0x620] sm:$0xff]
        %v336 = vld [vmem:[%s117 + $0x628] sm:$0xff]
        %v337 = vld [vmem:[%s117 + $0x630] sm:$0xff]
        %v338 = vld [vmem:[%s117 + $0x638] sm:$0xff]
        %v339 = vld [vmem:[%s117 + $0x640] sm:$0xff]
        %v340 = vld [vmem:[%s117 + $0x648] sm:$0xff]
        %v341 = vld [vmem:[%s117 + $0x650] sm:$0xff]
        %v342 = vld [vmem:[%s117 + $0x658] sm:$0xff]
        %v343 = vld [vmem:[%s117 + $0x660] sm:$0xff]
        %v344 = vld [vmem:[%s117 + $0x668] sm:$0xff]
        %v345 = vld [vmem:[%s117 + $0x670] sm:$0xff]
        %v346 = vld [vmem:[%s117 + $0x678] sm:$0xff]
        %v347 = vld [vmem:[%s117 + $0x680] sm:$0xff]
        %v348 = vld [vmem:[%s117 + $0x688] sm:$0xff]
        %v349 = vld [vmem:[%s117 + $0x690] sm:$0xff]
        %v350 = vld [vmem:[%s117 + $0x698] sm:$0xff]
        %v351 = vld [vmem:[%s117 + $0x6a0] sm:$0xff]
        %v352 = vld [vmem:[%s117 + $0x6a8] sm:$0xff]
        %v353 = vld [vmem:[%s117 + $0x6b0] sm:$0xff]
        %v354 = vld [vmem:[%s117 + $0x6b8] sm:$0xff]
        %v355 = vld [vmem:[%s117 + $0x6c0] sm:$0xff]
        %v356 = vld [vmem:[%s117 + $0x6c8] sm:$0xff]
        %v357 = vld [vmem:[%s117 + $0x6d0] sm:$0xff]
        %v358 = vld [vmem:[%s117 + $0x6d8] sm:$0xff]
        %v359 = vld [vmem:[%s117 + $0x6e0] sm:$0xff]
        %v360 = vld [vmem:[%s117 + $0x6e8] sm:$0xff]
        %v361 = vld [vmem:[%s117 + $0x6f0] sm:$0xff]
        %v362 = vld [vmem:[%s117 + $0x6f8] sm:$0xff]
        %v363 = vld [vmem:[%s117 + $0x700] sm:$0xff]
        %v364 = vld [vmem:[%s117 + $0x708] sm:$0xff]
        %v365 = vld [vmem:[%s117 + $0x710] sm:$0xff]
        %v366 = vld [vmem:[%s117 + $0x718] sm:$0xff]
        %v367 = vld [vmem:[%s117 + $0x720] sm:$0xff]
        %v368 = vld [vmem:[%s117 + $0x728] sm:$0xff]
        %v369 = vld [vmem:[%s117 + $0x730] sm:$0xff]
        %v370 = vld [vmem:[%s117 + $0x738] sm:$0xff]
        %v371 = vld [vmem:[%s117 + $0x740] sm:$0xff]
        %v372 = vld [vmem:[%s117 + $0x748] sm:$0xff]
        %v373 = vld [vmem:[%s117 + $0x750] sm:$0xff]
        %v374 = vld [vmem:[%s117 + $0x758] sm:$0xff]
        %v375 = vld [vmem:[%s117 + $0x760] sm:$0xff]
        %v376 = vld [vmem:[%s117 + $0x768] sm:$0xff]
        %v377 = vld [vmem:[%s117 + $0x770] sm:$0xff]
        %v378 = vld [vmem:[%s117 + $0x778] sm:$0xff]
        %v379 = vld [vmem:[%s117 + $0x780] sm:$0xff]
        %v380 = vld [vmem:[%s117 + $0x788] sm:$0xff]
        %v381 = vld [vmem:[%s117 + $0x790] sm:$0xff]
        %v382 = vld [vmem:[%s117 + $0x798] sm:$0xff]
        %v383 = vld [vmem:[%s117 + $0x7a0] sm:$0xff]
        %v384 = vld [vmem:[%s117 + $0x7a8] sm:$0xff]
        %v385 = vld [vmem:[%s117 + $0x7b0] sm:$0xff]
        %v386 = vld [vmem:[%s117 + $0x7b8] sm:$0xff]
        %v387 = vld [vmem:[%s117 + $0x7c0] sm:$0xff]
        %v388 = vld [vmem:[%s117 + $0x7c8] sm:$0xff]
        %v389 = vld [vmem:[%s117 + $0x7d0] sm:$0xff]
        %v390 = vld [vmem:[%s117 + $0x7d8] sm:$0xff]
        %v391 = vld [vmem:[%s117 + $0x7e0] sm:$0xff]
        %v392 = vld [vmem:[%s117 + $0x7e8] sm:$0xff]
        %v393 = vld [vmem:[%s117 + $0x7f0] sm:$0xff]
        %v394 = vld [vmem:[%s117 + $0x7f8] sm:$0xff]
        %v395 = vmax.f32 %v139, 0.0
        %v396 = vmax.f32 %v140, 0.0
        %v397 = vmax.f32 %v141, 0.0
        %v398 = vmax.f32 %v142, 0.0
        %v399 = vmax.f32 %v143, 0.0
        %v400 = vmax.f32 %v144, 0.0
        %v401 = vmax.f32 %v145, 0.0
        %v402 = vmax.f32 %v146, 0.0
        %v403 = vmax.f32 %v147, 0.0
        %v404 = vmax.f32 %v148, 0.0
        %v405 = vmax.f32 %v149, 0.0
        %v406 = vmax.f32 %v150, 0.0
        %v407 = vmax.f32 %v151, 0.0
        %v408 = vmax.f32 %v152, 0.0
        %v409 = vmax.f32 %v153, 0.0
        %v410 = vmax.f32 %v154, 0.0
        %v411 = vmax.f32 %v155, 0.0
        %v412 = vmax.f32 %v156, 0.0
        %v413 = vmax.f32 %v157, 0.0
        %v414 = vmax.f32 %v158, 0.0
        %v415 = vmax.f32 %v159, 0.0
        %v416 = vmax.f32 %v160, 0.0
        %v417 = vmax.f32 %v161, 0.0
        %v418 = vmax.f32 %v162, 0.0
        %v419 = vmax.f32 %v163, 0.0
        %v420 = vmax.f32 %v164, 0.0
        %v421 = vmax.f32 %v165, 0.0
        %v422 = vmax.f32 %v166, 0.0
        %v423 = vmax.f32 %v167, 0.0
        %v424 = vmax.f32 %v168, 0.0
        %v425 = vmax.f32 %v169, 0.0
        %v426 = vmax.f32 %v170, 0.0
        %v427 = vmax.f32 %v171, 0.0
        %v428 = vmax.f32 %v172, 0.0
        %v429 = vmax.f32 %v173, 0.0
        %v430 = vmax.f32 %v174, 0.0
        %v431 = vmax.f32 %v175, 0.0
        %v432 = vmax.f32 %v176, 0.0
        %v433 = vmax.f32 %v177, 0.0
        %v434 = vmax.f32 %v178, 0.0
        %v435 = vmax.f32 %v179, 0.0
        %v436 = vmax.f32 %v180, 0.0
        %v437 = vmax.f32 %v181, 0.0
        %v438 = vmax.f32 %v182, 0.0
        %v439 = vmax.f32 %v183, 0.0
        %v440 = vmax.f32 %v184, 0.0
        %v441 = vmax.f32 %v185, 0.0
        %v442 = vmax.f32 %v186, 0.0
        %v443 = vmax.f32 %v187, 0.0
        %v444 = vmax.f32 %v188, 0.0
        %v445 = vmax.f32 %v189, 0.0
        %v446 = vmax.f32 %v190, 0.0
        %v447 = vmax.f32 %v191, 0.0
        %v448 = vmax.f32 %v192, 0.0
        %v449 = vmax.f32 %v193, 0.0
        %v450 = vmax.f32 %v194, 0.0
        %v451 = vmax.f32 %v195, 0.0
        %v452 = vmax.f32 %v196, 0.0
        %v453 = vmax.f32 %v197, 0.0
        %v454 = vmax.f32 %v198, 0.0
        %v455 = vmax.f32 %v199, 0.0
        %v456 = vmax.f32 %v200, 0.0
        %v457 = vmax.f32 %v201, 0.0
        %v458 = vmax.f32 %v202, 0.0
        %v459 = vmax.f32 %v203, 0.0
        %v460 = vmax.f32 %v204, 0.0
        %v461 = vmax.f32 %v205, 0.0
        %v462 = vmax.f32 %v206, 0.0
        %v463 = vmax.f32 %v207, 0.0
        %v464 = vmax.f32 %v208, 0.0
        %v465 = vmax.f32 %v209, 0.0
        %v466 = vmax.f32 %v210, 0.0
        %v467 = vmax.f32 %v211, 0.0
        %v468 = vmax.f32 %v212, 0.0
        %v469 = vmax.f32 %v213, 0.0
        %v470 = vmax.f32 %v214, 0.0
        %v471 = vmax.f32 %v215, 0.0
        %v472 = vmax.f32 %v216, 0.0
        %v473 = vmax.f32 %v217, 0.0
        %v474 = vmax.f32 %v218, 0.0
        %v475 = vmax.f32 %v219, 0.0
        %v476 = vmax.f32 %v220, 0.0
        %v477 = vmax.f32 %v221, 0.0
        %v478 = vmax.f32 %v222, 0.0
        %v479 = vmax.f32 %v223, 0.0
        %v480 = vmax.f32 %v224, 0.0
        %v481 = vmax.f32 %v225, 0.0
        %v482 = vmax.f32 %v226, 0.0
        %v483 = vmax.f32 %v227, 0.0
        %v484 = vmax.f32 %v228, 0.0
        %v485 = vmax.f32 %v229, 0.0
        %v486 = vmax.f32 %v230, 0.0
        %v487 = vmax.f32 %v231, 0.0
        %v488 = vmax.f32 %v232, 0.0
        %v489 = vmax.f32 %v233, 0.0
        %v490 = vmax.f32 %v234, 0.0
        %v491 = vmax.f32 %v235, 0.0
        %v492 = vmax.f32 %v236, 0.0
        %v493 = vmax.f32 %v237, 0.0
        %v494 = vmax.f32 %v238, 0.0
        %v495 = vmax.f32 %v239, 0.0
        %v496 = vmax.f32 %v240, 0.0
        %v497 = vmax.f32 %v241, 0.0
        %v498 = vmax.f32 %v242, 0.0
        %v499 = vmax.f32 %v243, 0.0
        %v500 = vmax.f32 %v244, 0.0
        %v501 = vmax.f32 %v245, 0.0
        %v502 = vmax.f32 %v246, 0.0
        %v503 = vmax.f32 %v247, 0.0
        %v504 = vmax.f32 %v248, 0.0
        %v505 = vmax.f32 %v249, 0.0
        %v506 = vmax.f32 %v250, 0.0
        %v507 = vmax.f32 %v251, 0.0
        %v508 = vmax.f32 %v252, 0.0
        %v509 = vmax.f32 %v253, 0.0
        %v510 = vmax.f32 %v254, 0.0
        %v511 = vmax.f32 %v255, 0.0
        %v512 = vmax.f32 %v256, 0.0
        %v513 = vmax.f32 %v257, 0.0
        %v514 = vmax.f32 %v258, 0.0
        %v515 = vmax.f32 %v259, 0.0
        %v516 = vmax.f32 %v260, 0.0
        %v517 = vmax.f32 %v261, 0.0
        %v518 = vmax.f32 %v262, 0.0
        %v519 = vmax.f32 %v263, 0.0
        %v520 = vmax.f32 %v264, 0.0
        %v521 = vmax.f32 %v265, 0.0
        %v522 = vmax.f32 %v266, 0.0
        %v523 = vmax.f32 %v267, 0.0
        %v524 = vmax.f32 %v268, 0.0
        %v525 = vmax.f32 %v269, 0.0
        %v526 = vmax.f32 %v270, 0.0
        %v527 = vmax.f32 %v271, 0.0
        %v528 = vmax.f32 %v272, 0.0
        %v529 = vmax.f32 %v273, 0.0
        %v530 = vmax.f32 %v274, 0.0
        %v531 = vmax.f32 %v275, 0.0
        %v532 = vmax.f32 %v276, 0.0
        %v533 = vmax.f32 %v277, 0.0
        %v534 = vmax.f32 %v278, 0.0
        %v535 = vmax.f32 %v279, 0.0
        %v536 = vmax.f32 %v280, 0.0
        %v537 = vmax.f32 %v281, 0.0
        %v538 = vmax.f32 %v282, 0.0
        %v539 = vmax.f32 %v283, 0.0
        %v540 = vmax.f32 %v284, 0.0
        %v541 = vmax.f32 %v285, 0.0
        %v542 = vmax.f32 %v286, 0.0
        %v543 = vmax.f32 %v287, 0.0
        %v544 = vmax.f32 %v288, 0.0
        %v545 = vmax.f32 %v289, 0.0
        %v546 = vmax.f32 %v290, 0.0
        %v547 = vmax.f32 %v291, 0.0
        %v548 = vmax.f32 %v292, 0.0
        %v549 = vmax.f32 %v293, 0.0
        %v550 = vmax.f32 %v294, 0.0
        %v551 = vmax.f32 %v295, 0.0
        %v552 = vmax.f32 %v296, 0.0
        %v553 = vmax.f32 %v297, 0.0
        %v554 = vmax.f32 %v298, 0.0
        %v555 = vmax.f32 %v299, 0.0
        %v556 = vmax.f32 %v300, 0.0
        %v557 = vmax.f32 %v301, 0.0
        %v558 = vmax.f32 %v302, 0.0
        %v559 = vmax.f32 %v303, 0.0
        %v560 = vmax.f32 %v304, 0.0
        %v561 = vmax.f32 %v305, 0.0
        %v562 = vmax.f32 %v306, 0.0
        %v563 = vmax.f32 %v307, 0.0
        %v564 = vmax.f32 %v308, 0.0
        %v565 = vmax.f32 %v309, 0.0
        %v566 = vmax.f32 %v310, 0.0
        %v567 = vmax.f32 %v311, 0.0
        %v568 = vmax.f32 %v312, 0.0
        %v569 = vmax.f32 %v313, 0.0
        %v570 = vmax.f32 %v314, 0.0
        %v571 = vmax.f32 %v315, 0.0
        %v572 = vmax.f32 %v316, 0.0
        %v573 = vmax.f32 %v317, 0.0
        %v574 = vmax.f32 %v318, 0.0
        %v575 = vmax.f32 %v319, 0.0
        %v576 = vmax.f32 %v320, 0.0
        %v577 = vmax.f32 %v321, 0.0
        %v578 = vmax.f32 %v322, 0.0
        %v579 = vmax.f32 %v323, 0.0
        %v580 = vmax.f32 %v324, 0.0
        %v581 = vmax.f32 %v325, 0.0
        %v582 = vmax.f32 %v326, 0.0
        %v583 = vmax.f32 %v327, 0.0
        %v584 = vmax.f32 %v328, 0.0
        %v585 = vmax.f32 %v329, 0.0
        %v586 = vmax.f32 %v330, 0.0
        %v587 = vmax.f32 %v331, 0.0
        %v588 = vmax.f32 %v332, 0.0
        %v589 = vmax.f32 %v333, 0.0
        %v590 = vmax.f32 %v334, 0.0
        %v591 = vmax.f32 %v335, 0.0
        %v592 = vmax.f32 %v336, 0.0
        %v593 = vmax.f32 %v337, 0.0
        %v594 = vmax.f32 %v338, 0.0
        %v595 = vmax.f32 %v339, 0.0
        %v596 = vmax.f32 %v340, 0.0
        %v597 = vmax.f32 %v341, 0.0
        %v598 = vmax.f32 %v342, 0.0
        %v599 = vmax.f32 %v343, 0.0
        %v600 = vmax.f32 %v344, 0.0
        %v601 = vmax.f32 %v345, 0.0
        %v602 = vmax.f32 %v346, 0.0
        %v603 = vmax.f32 %v347, 0.0
        %v604 = vmax.f32 %v348, 0.0
        %v605 = vmax.f32 %v349, 0.0
        %v606 = vmax.f32 %v350, 0.0
        %v607 = vmax.f32 %v351, 0.0
        %v608 = vmax.f32 %v352, 0.0
        %v609 = vmax.f32 %v353, 0.0
        %v610 = vmax.f32 %v354, 0.0
        %v611 = vmax.f32 %v355, 0.0
        %v612 = vmax.f32 %v356, 0.0
        %v613 = vmax.f32 %v357, 0.0
        %v614 = vmax.f32 %v358, 0.0
        %v615 = vmax.f32 %v359, 0.0
        %v616 = vmax.f32 %v360, 0.0
        %v617 = vmax.f32 %v361, 0.0
        %v618 = vmax.f32 %v362, 0.0
        %v619 = vmax.f32 %v363, 0.0
        %v620 = vmax.f32 %v364, 0.0
        %v621 = vmax.f32 %v365, 0.0
        %v622 = vmax.f32 %v366, 0.0
        %v623 = vmax.f32 %v367, 0.0
        %v624 = vmax.f32 %v368, 0.0
        %v625 = vmax.f32 %v369, 0.0
        %v626 = vmax.f32 %v370, 0.0
        %v627 = vmax.f32 %v371, 0.0
        %v628 = vmax.f32 %v372, 0.0
        %v629 = vmax.f32 %v373, 0.0
        %v630 = vmax.f32 %v374, 0.0
        %v631 = vmax.f32 %v375, 0.0
        %v632 = vmax.f32 %v376, 0.0
        %v633 = vmax.f32 %v377, 0.0
        %v634 = vmax.f32 %v378, 0.0
        %v635 = vmax.f32 %v379, 0.0
        %v636 = vmax.f32 %v380, 0.0
        %v637 = vmax.f32 %v381, 0.0
        %v638 = vmax.f32 %v382, 0.0
        %v639 = vmax.f32 %v383, 0.0
        %v640 = vmax.f32 %v384, 0.0
        %v641 = vmax.f32 %v385, 0.0
        %v642 = vmax.f32 %v386, 0.0
        %v643 = vmax.f32 %v387, 0.0
        %v644 = vmax.f32 %v388, 0.0
        %v645 = vmax.f32 %v389, 0.0
        %v646 = vmax.f32 %v390, 0.0
        %v647 = vmax.f32 %v391, 0.0
        %v648 = vmax.f32 %v392, 0.0
        %v649 = vmax.f32 %v393, 0.0
        %v650 = vmax.f32 %v394, 0.0
        %v651 = vmul.f32 %v395, %v395
        %v652 = vmul.f32 %v396, %v396
        %v653 = vmul.f32 %v397, %v397
        %v654 = vmul.f32 %v398, %v398
        %v655 = vmul.f32 %v399, %v399
        %v656 = vmul.f32 %v400, %v400
        %v657 = vmul.f32 %v401, %v401
        %v658 = vmul.f32 %v402, %v402
        %v659 = vmul.f32 %v403, %v403
        %v660 = vmul.f32 %v404, %v404
        %v661 = vmul.f32 %v405, %v405
        %v662 = vmul.f32 %v406, %v406
        %v663 = vmul.f32 %v407, %v407
        %v664 = vmul.f32 %v408, %v408
        %v665 = vmul.f32 %v409, %v409
        %v666 = vmul.f32 %v410, %v410
        %v667 = vmul.f32 %v411, %v411
        %v668 = vmul.f32 %v412, %v412
        %v669 = vmul.f32 %v413, %v413
        %v670 = vmul.f32 %v414, %v414
        %v671 = vmul.f32 %v415, %v415
        %v672 = vmul.f32 %v416, %v416
        %v673 = vmul.f32 %v417, %v417
        %v674 = vmul.f32 %v418, %v418
        %v675 = vmul.f32 %v419, %v419
        %v676 = vmul.f32 %v420, %v420
        %v677 = vmul.f32 %v421, %v421
        %v678 = vmul.f32 %v422, %v422
        %v679 = vmul.f32 %v423, %v423
        %v680 = vmul.f32 %v424, %v424
        %v681 = vmul.f32 %v425, %v425
        %v682 = vmul.f32 %v426, %v426
        %v683 = vmul.f32 %v427, %v427
        %v684 = vmul.f32 %v428, %v428
        %v685 = vmul.f32 %v429, %v429
        %v686 = vmul.f32 %v430, %v430
        %v687 = vmul.f32 %v431, %v431
        %v688 = vmul.f32 %v432, %v432
        %v689 = vmul.f32 %v433, %v433
        %v690 = vmul.f32 %v434, %v434
        %v691 = vmul.f32 %v435, %v435
        %v692 = vmul.f32 %v436, %v436
        %v693 = vmul.f32 %v437, %v437
        %v694 = vmul.f32 %v438, %v438
        %v695 = vmul.f32 %v439, %v439
        %v696 = vmul.f32 %v440, %v440
        %v697 = vmul.f32 %v441, %v441
        %v698 = vmul.f32 %v442, %v442
        %v699 = vmul.f32 %v443, %v443
        %v700 = vmul.f32 %v444, %v444
        %v701 = vmul.f32 %v445, %v445
        %v702 = vmul.f32 %v446, %v446
        %v703 = vmul.f32 %v447, %v447
        %v704 = vmul.f32 %v448, %v448
        %v705 = vmul.f32 %v449, %v449
        %v706 = vmul.f32 %v450, %v450
        %v707 = vmul.f32 %v451, %v451
        %v708 = vmul.f32 %v452, %v452
        %v709 = vmul.f32 %v453, %v453
        %v710 = vmul.f32 %v454, %v454
        %v711 = vmul.f32 %v455, %v455
        %v712 = vmul.f32 %v456, %v456
        %v713 = vmul.f32 %v457, %v457
        %v714 = vmul.f32 %v458, %v458
        %v715 = vmul.f32 %v459, %v459
        %v716 = vmul.f32 %v460, %v460
        %v717 = vmul.f32 %v461, %v461
        %v718 = vmul.f32 %v462, %v462
        %v719 = vmul.f32 %v463, %v463
        %v720 = vmul.f32 %v464, %v464
        %v721 = vmul.f32 %v465, %v465
        %v722 = vmul.f32 %v466, %v466
        %v723 = vmul.f32 %v467, %v467
        %v724 = vmul.f32 %v468, %v468
        %v725 = vmul.f32 %v469, %v469
        %v726 = vmul.f32 %v470, %v470
        %v727 = vmul.f32 %v471, %v471
        %v728 = vmul.f32 %v472, %v472
        %v729 = vmul.f32 %v473, %v473
        %v730 = vmul.f32 %v474, %v474
        %v731 = vmul.f32 %v475, %v475
        %v732 = vmul.f32 %v476, %v476
        %v733 = vmul.f32 %v477, %v477
        %v734 = vmul.f32 %v478, %v478
        %v735 = vmul.f32 %v479, %v479
        %v736 = vmul.f32 %v480, %v480
        %v737 = vmul.f32 %v481, %v481
        %v738 = vmul.f32 %v482, %v482
        %v739 = vmul.f32 %v483, %v483
        %v740 = vmul.f32 %v484, %v484
        %v741 = vmul.f32 %v485, %v485
        %v742 = vmul.f32 %v486, %v486
        %v743 = vmul.f32 %v487, %v487
        %v744 = vmul.f32 %v488, %v488
        %v745 = vmul.f32 %v489, %v489
        %v746 = vmul.f32 %v490, %v490
        %v747 = vmul.f32 %v491, %v491
        %v748 = vmul.f32 %v492, %v492
        %v749 = vmul.f32 %v493, %v493
        %v750 = vmul.f32 %v494, %v494
        %v751 = vmul.f32 %v495, %v495
        %v752 = vmul.f32 %v496, %v496
        %v753 = vmul.f32 %v497, %v497
        %v754 = vmul.f32 %v498, %v498
        %v755 = vmul.f32 %v499, %v499
        %v756 = vmul.f32 %v500, %v500
        %v757 = vmul.f32 %v501, %v501
        %v758 = vmul.f32 %v502, %v502
        %v759 = vmul.f32 %v503, %v503
        %v760 = vmul.f32 %v504, %v504
        %v761 = vmul.f32 %v505, %v505
        %v762 = vmul.f32 %v506, %v506
        %v763 = vmul.f32 %v507, %v507
        %v764 = vmul.f32 %v508, %v508
        %v765 = vmul.f32 %v509, %v509
        %v766 = vmul.f32 %v510, %v510
        %v767 = vmul.f32 %v511, %v511
        %v768 = vmul.f32 %v512, %v512
        %v769 = vmul.f32 %v513, %v513
        %v770 = vmul.f32 %v514, %v514
        %v771 = vmul.f32 %v515, %v515
        %v772 = vmul.f32 %v516, %v516
        %v773 = vmul.f32 %v517, %v517
        %v774 = vmul.f32 %v518, %v518
        %v775 = vmul.f32 %v519, %v519
        %v776 = vmul.f32 %v520, %v520
        %v777 = vmul.f32 %v521, %v521
        %v778 = vmul.f32 %v522, %v522
        %v779 = vmul.f32 %v523, %v523
        %v780 = vmul.f32 %v524, %v524
        %v781 = vmul.f32 %v525, %v525
        %v782 = vmul.f32 %v526, %v526
        %v783 = vmul.f32 %v527, %v527
        %v784 = vmul.f32 %v528, %v528
        %v785 = vmul.f32 %v529, %v529
        %v786 = vmul.f32 %v530, %v530
        %v787 = vmul.f32 %v531, %v531
        %v788 = vmul.f32 %v532, %v532
        %v789 = vmul.f32 %v533, %v533
        %v790 = vmul.f32 %v534, %v534
        %v791 = vmul.f32 %v535, %v535
        %v792 = vmul.f32 %v536, %v536
        %v793 = vmul.f32 %v537, %v537
        %v794 = vmul.f32 %v538, %v538
        %v795 = vmul.f32 %v539, %v539
        %v796 = vmul.f32 %v540, %v540
        %v797 = vmul.f32 %v541, %v541
        %v798 = vmul.f32 %v542, %v542
        %v799 = vmul.f32 %v543, %v543
        %v800 = vmul.f32 %v544, %v544
        %v801 = vmul.f32 %v545, %v545
        %v802 = vmul.f32 %v546, %v546
        %v803 = vmul.f32 %v547, %v547
        %v804 = vmul.f32 %v548, %v548
        %v805 = vmul.f32 %v549, %v549
        %v806 = vmul.f32 %v550, %v550
        %v807 = vmul.f32 %v551, %v551
        %v808 = vmul.f32 %v552, %v552
        %v809 = vmul.f32 %v553, %v553
        %v810 = vmul.f32 %v554, %v554
        %v811 = vmul.f32 %v555, %v555
        %v812 = vmul.f32 %v556, %v556
        %v813 = vmul.f32 %v557, %v557
        %v814 = vmul.f32 %v558, %v558
        %v815 = vmul.f32 %v559, %v559
        %v816 = vmul.f32 %v560, %v560
        %v817 = vmul.f32 %v561, %v561
        %v818 = vmul.f32 %v562, %v562
        %v819 = vmul.f32 %v563, %v563
        %v820 = vmul.f32 %v564, %v564
        %v821 = vmul.f32 %v565, %v565
        %v822 = vmul.f32 %v566, %v566
        %v823 = vmul.f32 %v567, %v567
        %v824 = vmul.f32 %v568, %v568
        %v825 = vmul.f32 %v569, %v569
        %v826 = vmul.f32 %v570, %v570
        %v827 = vmul.f32 %v571, %v571
        %v828 = vmul.f32 %v572, %v572
        %v829 = vmul.f32 %v573, %v573
        %v830 = vmul.f32 %v574, %v574
        %v831 = vmul.f32 %v575, %v575
        %v832 = vmul.f32 %v576, %v576
        %v833 = vmul.f32 %v577, %v577
        %v834 = vmul.f32 %v578, %v578
        %v835 = vmul.f32 %v579, %v579
        %v836 = vmul.f32 %v580, %v580
        %v837 = vmul.f32 %v581, %v581
        %v838 = vmul.f32 %v582, %v582
        %v839 = vmul.f32 %v583, %v583
        %v840 = vmul.f32 %v584, %v584
        %v841 = vmul.f32 %v585, %v585
        %v842 = vmul.f32 %v586, %v586
        %v843 = vmul.f32 %v587, %v587
        %v844 = vmul.f32 %v588, %v588
        %v845 = vmul.f32 %v589, %v589
        %v846 = vmul.f32 %v590, %v590
        %v847 = vmul.f32 %v591, %v591
        %v848 = vmul.f32 %v592, %v592
        %v849 = vmul.f32 %v593, %v593
        %v850 = vmul.f32 %v594, %v594
        %v851 = vmul.f32 %v595, %v595
        %v852 = vmul.f32 %v596, %v596
        %v853 = vmul.f32 %v597, %v597
        %v854 = vmul.f32 %v598, %v598
        %v855 = vmul.f32 %v599, %v599
        %v856 = vmul.f32 %v600, %v600
        %v857 = vmul.f32 %v601, %v601
        %v858 = vmul.f32 %v602, %v602
        %v859 = vmul.f32 %v603, %v603
        %v860 = vmul.f32 %v604, %v604
        %v861 = vmul.f32 %v605, %v605
        %v862 = vmul.f32 %v606, %v606
        %v863 = vmul.f32 %v607, %v607
        %v864 = vmul.f32 %v608, %v608
        %v865 = vmul.f32 %v609, %v609
        %v866 = vmul.f32 %v610, %v610
        %v867 = vmul.f32 %v611, %v611
        %v868 = vmul.f32 %v612, %v612
        %v869 = vmul.f32 %v613, %v613
        %v870 = vmul.f32 %v614, %v614
        %v871 = vmul.f32 %v615, %v615
        %v872 = vmul.f32 %v616, %v616
        %v873 = vmul.f32 %v617, %v617
        %v874 = vmul.f32 %v618, %v618
        %v875 = vmul.f32 %v619, %v619
        %v876 = vmul.f32 %v620, %v620
        %v877 = vmul.f32 %v621, %v621
        %v878 = vmul.f32 %v622, %v622
        %v879 = vmul.f32 %v623, %v623
        %v880 = vmul.f32 %v624, %v624
        %v881 = vmul.f32 %v625, %v625
        %v882 = vmul.f32 %v626, %v626
        %v883 = vmul.f32 %v627, %v627
        %v884 = vmul.f32 %v628, %v628
        %v885 = vmul.f32 %v629, %v629
        %v886 = vmul.f32 %v630, %v630
        %v887 = vmul.f32 %v631, %v631
        %v888 = vmul.f32 %v632, %v632
        %v889 = vmul.f32 %v633, %v633
        %v890 = vmul.f32 %v634, %v634
        %v891 = vmul.f32 %v635, %v635
        %v892 = vmul.f32 %v636, %v636
        %v893 = vmul.f32 %v637, %v637
        %v894 = vmul.f32 %v638, %v638
        %v895 = vmul.f32 %v639, %v639
        %v896 = vmul.f32 %v640, %v640
        %v897 = vmul.f32 %v641, %v641
        %v898 = vmul.f32 %v642, %v642
        %v899 = vmul.f32 %v643, %v643
        %v900 = vmul.f32 %v644, %v644
        %v901 = vmul.f32 %v645, %v645
        %v902 = vmul.f32 %v646, %v646
        %v903 = vmul.f32 %v647, %v647
        %v904 = vmul.f32 %v648, %v648
        %v905 = vmul.f32 %v649, %v649
        %v906 = vmul.f32 %v650, %v650
        %907 = vst [vmem:[%s136] sm:$0xff] %v651
        %908 = vst [vmem:[%s136 + $0x8] sm:$0xff] %v652
        %909 = vst [vmem:[%s136 + $0x10] sm:$0xff] %v653
        %910 = vst [vmem:[%s136 + $0x18] sm:$0xff] %v654
        %911 = vst [vmem:[%s136 + $0x20] sm:$0xff] %v655
        %912 = vst [vmem:[%s136 + $0x28] sm:$0xff] %v656
        %913 = vst [vmem:[%s136 + $0x30] sm:$0xff] %v657
        %914 = vst [vmem:[%s136 + $0x38] sm:$0xff] %v658
        %915 = vst [vmem:[%s136 + $0x40] sm:$0xff] %v659
        %916 = vst [vmem:[%s136 + $0x48] sm:$0xff] %v660
        %917 = vst [vmem:[%s136 + $0x50] sm:$0xff] %v661
        %918 = vst [vmem:[%s136 + $0x58] sm:$0xff] %v662
        %919 = vst [vmem:[%s136 + $0x60] sm:$0xff] %v663
        %920 = vst [vmem:[%s136 + $0x68] sm:$0xff] %v664
        %921 = vst [vmem:[%s136 + $0x70] sm:$0xff] %v665
        %922 = vst [vmem:[%s136 + $0x78] sm:$0xff] %v666
        %923 = vst [vmem:[%s136 + $0x80] sm:$0xff] %v667
        %924 = vst [vmem:[%s136 + $0x88] sm:$0xff] %v668
        %925 = vst [vmem:[%s136 + $0x90] sm:$0xff] %v669
        %926 = vst [vmem:[%s136 + $0x98] sm:$0xff] %v670
        %927 = vst [vmem:[%s136 + $0xa0] sm:$0xff] %v671
        %928 = vst [vmem:[%s136 + $0xa8] sm:$0xff] %v672
        %929 = vst [vmem:[%s136 + $0xb0] sm:$0xff] %v673
        %930 = vst [vmem:[%s136 + $0xb8] sm:$0xff] %v674
        %931 = vst [vmem:[%s136 + $0xc0] sm:$0xff] %v675
        %932 = vst [vmem:[%s136 + $0xc8] sm:$0xff] %v676
        %933 = vst [vmem:[%s136 + $0xd0] sm:$0xff] %v677
        %934 = vst [vmem:[%s136 + $0xd8] sm:$0xff] %v678
        %935 = vst [vmem:[%s136 + $0xe0] sm:$0xff] %v679
        %936 = vst [vmem:[%s136 + $0xe8] sm:$0xff] %v680
        %937 = vst [vmem:[%s136 + $0xf0] sm:$0xff] %v681
        %938 = vst [vmem:[%s136 + $0xf8] sm:$0xff] %v682
        %939 = vst [vmem:[%s136 + $0x100] sm:$0xff] %v683
        %940 = vst [vmem:[%s136 + $0x108] sm:$0xff] %v684
        %941 = vst [vmem:[%s136 + $0x110] sm:$0xff] %v685
        %942 = vst [vmem:[%s136 + $0x118] sm:$0xff] %v686
        %943 = vst [vmem:[%s136 + $0x120] sm:$0xff] %v687
        %944 = vst [vmem:[%s136 + $0x128] sm:$0xff] %v688
        %945 = vst [vmem:[%s136 + $0x130] sm:$0xff] %v689
        %946 = vst [vmem:[%s136 + $0x138] sm:$0xff] %v690
        %947 = vst [vmem:[%s136 + $0x140] sm:$0xff] %v691
        %948 = vst [vmem:[%s136 + $0x148] sm:$0xff] %v692
        %949 = vst [vmem:[%s136 + $0x150] sm:$0xff] %v693
        %950 = vst [vmem:[%s136 + $0x158] sm:$0xff] %v694
        %951 = vst [vmem:[%s136 + $0x160] sm:$0xff] %v695
        %952 = vst [vmem:[%s136 + $0x168] sm:$0xff] %v696
        %953 = vst [vmem:[%s136 + $0x170] sm:$0xff] %v697
        %954 = vst [vmem:[%s136 + $0x178] sm:$0xff] %v698
        %955 = vst [vmem:[%s136 + $0x180] sm:$0xff] %v699
        %956 = vst [vmem:[%s136 + $0x188] sm:$0xff] %v700
        %957 = vst [vmem:[%s136 + $0x190] sm:$0xff] %v701
        %958 = vst [vmem:[%s136 + $0x198] sm:$0xff] %v702
        %959 = vst [vmem:[%s136 + $0x1a0] sm:$0xff] %v703
        %960 = vst [vmem:[%s136 + $0x1a8] sm:$0xff] %v704
        %961 = vst [vmem:[%s136 + $0x1b0] sm:$0xff] %v705
        %962 = vst [vmem:[%s136 + $0x1b8] sm:$0xff] %v706
        %963 = vst [vmem:[%s136 + $0x1c0] sm:$0xff] %v707
        %964 = vst [vmem:[%s136 + $0x1c8] sm:$0xff] %v708
        %965 = vst [vmem:[%s136 + $0x1d0] sm:$0xff] %v709
        %966 = vst [vmem:[%s136 + $0x1d8] sm:$0xff] %v710
        %967 = vst [vmem:[%s136 + $0x1e0] sm:$0xff] %v711
        %968 = vst [vmem:[%s136 + $0x1e8] sm:$0xff] %v712
        %969 = vst [vmem:[%s136 + $0x1f0] sm:$0xff] %v713
        %970 = vst [vmem:[%s136 + $0x1f8] sm:$0xff] %v714
        %971 = vst [vmem:[%s136 + $0x200] sm:$0xff] %v715
        %972 = vst [vmem:[%s136 + $0x208] sm:$0xff] %v716
        %973 = vst [vmem:[%s136 + $0x210] sm:$0xff] %v717
        %974 = vst [vmem:[%s136 + $0x218] sm:$0xff] %v718
        %975 = vst [vmem:[%s136 + $0x220] sm:$0xff] %v719
        %976 = vst [vmem:[%s136 + $0x228] sm:$0xff] %v720
        %977 = vst [vmem:[%s136 + $0x230] sm:$0xff] %v721
        %978 = vst [vmem:[%s136 + $0x238] sm:$0xff] %v722
        %979 = vst [vmem:[%s136 + $0x240] sm:$0xff] %v723
        %980 = vst [vmem:[%s136 + $0x248] sm:$0xff] %v724
        %981 = vst [vmem:[%s136 + $0x250] sm:$0xff] %v725
        %982 = vst [vmem:[%s136 + $0x258] sm:$0xff] %v726
        %983 = vst [vmem:[%s136 + $0x260] sm:$0xff] %v727
        %984 = vst [vmem:[%s136 + $0x268] sm:$0xff] %v728
        %985 = vst [vmem:[%s136 + $0x270] sm:$0xff] %v729
        %986 = vst [vmem:[%s136 + $0x278] sm:$0xff] %v730
        %987 = vst [vmem:[%s136 + $0x280] sm:$0xff] %v731
        %988 = vst [vmem:[%s136 + $0x288] sm:$0xff] %v732
        %989 = vst [vmem:[%s136 + $0x290] sm:$0xff] %v733
        %990 = vst [vmem:[%s136 + $0x298] sm:$0xff] %v734
        %991 = vst [vmem:[%s136 + $0x2a0] sm:$0xff] %v735
        %992 = vst [vmem:[%s136 + $0x2a8] sm:$0xff] %v736
        %993 = vst [vmem:[%s136 + $0x2b0] sm:$0xff] %v737
        %994 = vst [vmem:[%s136 + $0x2b8] sm:$0xff] %v738
        %995 = vst [vmem:[%s136 + $0x2c0] sm:$0xff] %v739
        %996 = vst [vmem:[%s136 + $0x2c8] sm:$0xff] %v740
        %997 = vst [vmem:[%s136 + $0x2d0] sm:$0xff] %v741
        %998 = vst [vmem:[%s136 + $0x2d8] sm:$0xff] %v742
        %999 = vst [vmem:[%s136 + $0x2e0] sm:$0xff] %v743
        %1000 = vst [vmem:[%s136 + $0x2e8] sm:$0xff] %v744
        %1001 = vst [vmem:[%s136 + $0x2f0] sm:$0xff] %v745
        %1002 = vst [vmem:[%s136 + $0x2f8] sm:$0xff] %v746
        %1003 = vst [vmem:[%s136 + $0x300] sm:$0xff] %v747
        %1004 = vst [vmem:[%s136 + $0x308] sm:$0xff] %v748
        %1005 = vst [vmem:[%s136 + $0x310] sm:$0xff] %v749
        %1006 = vst [vmem:[%s136 + $0x318] sm:$0xff] %v750
        %1007 = vst [vmem:[%s136 + $0x320] sm:$0xff] %v751
        %1008 = vst [vmem:[%s136 + $0x328] sm:$0xff] %v752
        %1009 = vst [vmem:[%s136 + $0x330] sm:$0xff] %v753
        %1010 = vst [vmem:[%s136 + $0x338] sm:$0xff] %v754
        %1011 = vst [vmem:[%s136 + $0x340] sm:$0xff] %v755
        %1012 = vst [vmem:[%s136 + $0x348] sm:$0xff] %v756
        %1013 = vst [vmem:[%s136 + $0x350] sm:$0xff] %v757
        %1014 = vst [vmem:[%s136 + $0x358] sm:$0xff] %v758
        %1015 = vst [vmem:[%s136 + $0x360] sm:$0xff] %v759
        %1016 = vst [vmem:[%s136 + $0x368] sm:$0xff] %v760
        %1017 = vst [vmem:[%s136 + $0x370] sm:$0xff] %v761
        %1018 = vst [vmem:[%s136 + $0x378] sm:$0xff] %v762
        %1019 = vst [vmem:[%s136 + $0x380] sm:$0xff] %v763
        %1020 = vst [vmem:[%s136 + $0x388] sm:$0xff] %v764
        %1021 = vst [vmem:[%s136 + $0x390] sm:$0xff] %v765
        %1022 = vst [vmem:[%s136 + $0x398] sm:$0xff] %v766
        %1023 = vst [vmem:[%s136 + $0x3a0] sm:$0xff] %v767
        %1024 = vst [vmem:[%s136 + $0x3a8] sm:$0xff] %v768
        %1025 = vst [vmem:[%s136 + $0x3b0] sm:$0xff] %v769
        %1026 = vst [vmem:[%s136 + $0x3b8] sm:$0xff] %v770
        %1027 = vst [vmem:[%s136 + $0x3c0] sm:$0xff] %v771
        %1028 = vst [vmem:[%s136 + $0x3c8] sm:$0xff] %v772
        %1029 = vst [vmem:[%s136 + $0x3d0] sm:$0xff] %v773
        %1030 = vst [vmem:[%s136 + $0x3d8] sm:$0xff] %v774
        %1031 = vst [vmem:[%s136 + $0x3e0] sm:$0xff] %v775
        %1032 = vst [vmem:[%s136 + $0x3e8] sm:$0xff] %v776
        %1033 = vst [vmem:[%s136 + $0x3f0] sm:$0xff] %v777
        %1034 = vst [vmem:[%s136 + $0x3f8] sm:$0xff] %v778
        %1035 = vst [vmem:[%s136 + $0x400] sm:$0xff] %v779
        %1036 = vst [vmem:[%s136 + $0x408] sm:$0xff] %v780
        %1037 = vst [vmem:[%s136 + $0x410] sm:$0xff] %v781
        %1038 = vst [vmem:[%s136 + $0x418] sm:$0xff] %v782
        %1039 = vst [vmem:[%s136 + $0x420] sm:$0xff] %v783
        %1040 = vst [vmem:[%s136 + $0x428] sm:$0xff] %v784
        %1041 = vst [vmem:[%s136 + $0x430] sm:$0xff] %v785
        %1042 = vst [vmem:[%s136 + $0x438] sm:$0xff] %v786
        %1043 = vst [vmem:[%s136 + $0x440] sm:$0xff] %v787
        %1044 = vst [vmem:[%s136 + $0x448] sm:$0xff] %v788
        %1045 = vst [vmem:[%s136 + $0x450] sm:$0xff] %v789
        %1046 = vst [vmem:[%s136 + $0x458] sm:$0xff] %v790
        %1047 = vst [vmem:[%s136 + $0x460] sm:$0xff] %v791
        %1048 = vst [vmem:[%s136 + $0x468] sm:$0xff] %v792
        %1049 = vst [vmem:[%s136 + $0x470] sm:$0xff] %v793
        %1050 = vst [vmem:[%s136 + $0x478] sm:$0xff] %v794
        %1051 = vst [vmem:[%s136 + $0x480] sm:$0xff] %v795
        %1052 = vst [vmem:[%s136 + $0x488] sm:$0xff] %v796
        %1053 = vst [vmem:[%s136 + $0x490] sm:$0xff] %v797
        %1054 = vst [vmem:[%s136 + $0x498] sm:$0xff] %v798
        %1055 = vst [vmem:[%s136 + $0x4a0] sm:$0xff] %v799
        %1056 = vst [vmem:[%s136 + $0x4a8] sm:$0xff] %v800
        %1057 = vst [vmem:[%s136 + $0x4b0] sm:$0xff] %v801
        %1058 = vst [vmem:[%s136 + $0x4b8] sm:$0xff] %v802
        %1059 = vst [vmem:[%s136 + $0x4c0] sm:$0xff] %v803
        %1060 = vst [vmem:[%s136 + $0x4c8] sm:$0xff] %v804
        %1061 = vst [vmem:[%s136 + $0x4d0] sm:$0xff] %v805
        %1062 = vst [vmem:[%s136 + $0x4d8] sm:$0xff] %v806
        %1063 = vst [vmem:[%s136 + $0x4e0] sm:$0xff] %v807
        %1064 = vst [vmem:[%s136 + $0x4e8] sm:$0xff] %v808
        %1065 = vst [vmem:[%s136 + $0x4f0] sm:$0xff] %v809
        %1066 = vst [vmem:[%s136 + $0x4f8] sm:$0xff] %v810
        %1067 = vst [vmem:[%s136 + $0x500] sm:$0xff] %v811
        %1068 = vst [vmem:[%s136 + $0x508] sm:$0xff] %v812
        %1069 = vst [vmem:[%s136 + $0x510] sm:$0xff] %v813
        %1070 = vst [vmem:[%s136 + $0x518] sm:$0xff] %v814
        %1071 = vst [vmem:[%s136 + $0x520] sm:$0xff] %v815
        %1072 = vst [vmem:[%s136 + $0x528] sm:$0xff] %v816
        %1073 = vst [vmem:[%s136 + $0x530] sm:$0xff] %v817
        %1074 = vst [vmem:[%s136 + $0x538] sm:$0xff] %v818
        %1075 = vst [vmem:[%s136 + $0x540] sm:$0xff] %v819
        %1076 = vst [vmem:[%s136 + $0x548] sm:$0xff] %v820
        %1077 = vst [vmem:[%s136 + $0x550] sm:$0xff] %v821
        %1078 = vst [vmem:[%s136 + $0x558] sm:$0xff] %v822
        %1079 = vst [vmem:[%s136 + $0x560] sm:$0xff] %v823
        %1080 = vst [vmem:[%s136 + $0x568] sm:$0xff] %v824
        %1081 = vst [vmem:[%s136 + $0x570] sm:$0xff] %v825
        %1082 = vst [vmem:[%s136 + $0x578] sm:$0xff] %v826
        %1083 = vst [vmem:[%s136 + $0x580] sm:$0xff] %v827
        %1084 = vst [vmem:[%s136 + $0x588] sm:$0xff] %v828
        %1085 = vst [vmem:[%s136 + $0x590] sm:$0xff] %v829
        %1086 = vst [vmem:[%s136 + $0x598] sm:$0xff] %v830
        %1087 = vst [vmem:[%s136 + $0x5a0] sm:$0xff] %v831
        %1088 = vst [vmem:[%s136 + $0x5a8] sm:$0xff] %v832
        %1089 = vst [vmem:[%s136 + $0x5b0] sm:$0xff] %v833
        %1090 = vst [vmem:[%s136 + $0x5b8] sm:$0xff] %v834
        %1091 = vst [vmem:[%s136 + $0x5c0] sm:$0xff] %v835
        %1092 = vst [vmem:[%s136 + $0x5c8] sm:$0xff] %v836
        %1093 = vst [vmem:[%s136 + $0x5d0] sm:$0xff] %v837
        %1094 = vst [vmem:[%s136 + $0x5d8] sm:$0xff] %v838
        %1095 = vst [vmem:[%s136 + $0x5e0] sm:$0xff] %v839
        %1096 = vst [vmem:[%s136 + $0x5e8] sm:$0xff] %v840
        %1097 = vst [vmem:[%s136 + $0x5f0] sm:$0xff] %v841
        %1098 = vst [vmem:[%s136 + $0x5f8] sm:$0xff] %v842
        %1099 = vst [vmem:[%s136 + $0x600] sm:$0xff] %v843
        %1100 = vst [vmem:[%s136 + $0x608] sm:$0xff] %v844
        %1101 = vst [vmem:[%s136 + $0x610] sm:$0xff] %v845
        %1102 = vst [vmem:[%s136 + $0x618] sm:$0xff] %v846
        %1103 = vst [vmem:[%s136 + $0x620] sm:$0xff] %v847
        %1104 = vst [vmem:[%s136 + $0x628] sm:$0xff] %v848
        %1105 = vst [vmem:[%s136 + $0x630] sm:$0xff] %v849
        %1106 = vst [vmem:[%s136 + $0x638] sm:$0xff] %v850
        %1107 = vst [vmem:[%s136 + $0x640] sm:$0xff] %v851
        %1108 = vst [vmem:[%s136 + $0x648] sm:$0xff] %v852
        %1109 = vst [vmem:[%s136 + $0x650] sm:$0xff] %v853
        %1110 = vst [vmem:[%s136 + $0x658] sm:$0xff] %v854
        %1111 = vst [vmem:[%s136 + $0x660] sm:$0xff] %v855
        %1112 = vst [vmem:[%s136 + $0x668] sm:$0xff] %v856
        %1113 = vst [vmem:[%s136 + $0x670] sm:$0xff] %v857
        %1114 = vst [vmem:[%s136 + $0x678] sm:$0xff] %v858
        %1115 = vst [vmem:[%s136 + $0x680] sm:$0xff] %v859
        %1116 = vst [vmem:[%s136 + $0x688] sm:$0xff] %v860
        %1117 = vst [vmem:[%s136 + $0x690] sm:$0xff] %v861
        %1118 = vst [vmem:[%s136 + $0x698] sm:$0xff] %v862
        %1119 = vst [vmem:[%s136 + $0x6a0] sm:$0xff] %v863
        %1120 = vst [vmem:[%s136 + $0x6a8] sm:$0xff] %v864
        %1121 = vst [vmem:[%s136 + $0x6b0] sm:$0xff] %v865
        %1122 = vst [vmem:[%s136 + $0x6b8] sm:$0xff] %v866
        %1123 = vst [vmem:[%s136 + $0x6c0] sm:$0xff] %v867
        %1124 = vst [vmem:[%s136 + $0x6c8] sm:$0xff] %v868
        %1125 = vst [vmem:[%s136 + $0x6d0] sm:$0xff] %v869
        %1126 = vst [vmem:[%s136 + $0x6d8] sm:$0xff] %v870
        %1127 = vst [vmem:[%s136 + $0x6e0] sm:$0xff] %v871
        %1128 = vst [vmem:[%s136 + $0x6e8] sm:$0xff] %v872
        %1129 = vst [vmem:[%s136 + $0x6f0] sm:$0xff] %v873
        %1130 = vst [vmem:[%s136 + $0x6f8] sm:$0xff] %v874
        %1131 = vst [vmem:[%s136 + $0x700] sm:$0xff] %v875
        %1132 = vst [vmem:[%s136 + $0x708] sm:$0xff] %v876
        %1133 = vst [vmem:[%s136 + $0x710] sm:$0xff] %v877
        %1134 = vst [vmem:[%s136 + $0x718] sm:$0xff] %v878
        %1135 = vst [vmem:[%s136 + $0x720] sm:$0xff] %v879
        %1136 = vst [vmem:[%s136 + $0x728] sm:$0xff] %v880
        %1137 = vst [vmem:[%s136 + $0x730] sm:$0xff] %v881
        %1138 = vst [vmem:[%s136 + $0x738] sm:$0xff] %v882
        %1139 = vst [vmem:[%s136 + $0x740] sm:$0xff] %v883
        %1140 = vst [vmem:[%s136 + $0x748] sm:$0xff] %v884
        %1141 = vst [vmem:[%s136 + $0x750] sm:$0xff] %v885
        %1142 = vst [vmem:[%s136 + $0x758] sm:$0xff] %v886
        %1143 = vst [vmem:[%s136 + $0x760] sm:$0xff] %v887
        %1144 = vst [vmem:[%s136 + $0x768] sm:$0xff] %v888
        %1145 = vst [vmem:[%s136 + $0x770] sm:$0xff] %v889
        %1146 = vst [vmem:[%s136 + $0x778] sm:$0xff] %v890
        %1147 = vst [vmem:[%s136 + $0x780] sm:$0xff] %v891
        %1148 = vst [vmem:[%s136 + $0x788] sm:$0xff] %v892
        %1149 = vst [vmem:[%s136 + $0x790] sm:$0xff] %v893
        %1150 = vst [vmem:[%s136 + $0x798] sm:$0xff] %v894
        %1151 = vst [vmem:[%s136 + $0x7a0] sm:$0xff] %v895
        %1152 = vst [vmem:[%s136 + $0x7a8] sm:$0xff] %v896
        %1153 = vst [vmem:[%s136 + $0x7b0] sm:$0xff] %v897
        %1154 = vst [vmem:[%s136 + $0x7b8] sm:$0xff] %v898
        %1155 = vst [vmem:[%s136 + $0x7c0] sm:$0xff] %v899
        %1156 = vst [vmem:[%s136 + $0x7c8] sm:$0xff] %v900
        %1157 = vst [vmem:[%s136 + $0x7d0] sm:$0xff] %v901
        %1158 = vst [vmem:[%s136 + $0x7d8] sm:$0xff] %v902
        %1159 = vst [vmem:[%s136 + $0x7e0] sm:$0xff] %v903
        %1160 = vst [vmem:[%s136 + $0x7e8] sm:$0xff] %v904
        %1161 = vst [vmem:[%s136 + $0x7f0] sm:$0xff] %v905
        %1162 = vst [vmem:[%s136 + $0x7f8] sm:$0xff] %v906
        %s1163 = sand.u32 %s52, 1
        %s1164 = scalar_lea.sflag [#allocation4], %s1163
        %s1165 = sand.u32 %s52, 1
        %s1166 = smul.addr %s1165, 2048
        %s1167 = scalar_lea.vmem [#allocation5], %s1166
        // Predicated region
        $region29: #{tpu_custom_call.1} parent=23 // pred_check
          %p1168 = pneg %p62
        $region30: #{tpu_custom_call.1} parent=23 // pred_check_branch
          %1170 = sbr.rel (%p1168) target = $region32
        $region31: #{tpu_custom_call.1} parent=23 // pred_region
          %s1171 = smul.u32 256, %s18
          %1173 = vsyncadd %s1164, 0
          %s1174 = smul.addr %s1171, 8
          %s1175 = scalar_lea.hbm %s1, %s1174
          %s1176 = sshll.u32 %s1167, 4
          %s1177 = int_to_ptr.vmem [resolvable:$true] %s1176
          %s1178 = sshll.u32 %s1175, 4
          %s1179 = int_to_ptr.hbm [resolvable:$true] %s1178
          %1184 = dma.vmem_to_hbm [thread:$0]  %s1177, 32768, %s1179, %s1164, 128, 128, 8
        $region32: #{tpu_custom_call.1} parent=23 // pred_fallthru
          _
      $region24: #{tpu_custom_call.1} parent=5 // pred_fallthru
        _
      %p1185 = scmp.le.s32.totalorder 2, %s13
      // Predicated region
      $region33: #{tpu_custom_call.1} parent=5 // pred_check
        %p1186 = pneg %p1185
      $region34: #{tpu_custom_call.1} parent=5 // pred_check_branch
        %1188 = sbr.rel (%p1186) target = $region36
      $region35: #{tpu_custom_call.1} parent=5 // pred_region
        %s1189 = ssub.s32 %s13, 2
        // Predicated region
        $region37: #{tpu_custom_call.1} parent=35 // pred_check
          %p1190 = pneg %p68
        $region38: #{tpu_custom_call.1} parent=35 // pred_check_branch
          %1192 = sbr.rel (%p1190) target = $region40
        $region39: #{tpu_custom_call.1} parent=35 // pred_region
          %s1193 = sand.u32 %s53, 1
          %s1194 = scalar_lea.sflag [#allocation4], %s1193
          %s1195 = sand.u32 %s53, 1
          %s1196 = smul.addr %s1195, 2048
          %s1197 = scalar_lea.vmem [#allocation5], %s1196
          %1199 = dma.done %s1194, 32768
        $region40: #{tpu_custom_call.1} parent=35 // pred_fallthru
          _
      $region36: #{tpu_custom_call.1} parent=5 // pred_fallthru
        _
    $region6: #{tpu_custom_call.1} parent=1 // loop_footer
      %s17 = sadd.s32 1, %s13
    $region7: #{tpu_custom_call.1} parent=1 // loop_footer_branch
      %12 = sbr.rel target = $region3
    $region8: #{tpu_custom_call.1} parent=1 // loop_exit
      _
    %1200 = vsyncpa [#allocation3], 1
    %s1201 = scalar_lea.sflag [#allocation3], 1
    %1202 = vsyncpa %s1201, 1
    %1203 = vsyncpa [#allocation4], 1
    %s1204 = scalar_lea.sflag [#allocation4], 1
    %1205 = vsyncpa %s1204, 1

</llo_original>
